<compile_context>
chip_gen: v6e
topology: v6e:2x2x1
jax: 0.10.0
libtpu: 0.0.40
codegen_flags: <defaults>
</compile_context>

<pallas_src>
import functools

import jax
import jax.numpy as jnp
from jax.experimental import pallas as pl
from jax.experimental.pallas import tpu as pltpu

_LANES = 128
_SUBLANES = 8


def _round_up(v, m):
    return (v + m - 1) // m * m


# -----------------------------------------------------------------------------
# Pallas kernel: one batch tile through the whole MLP (matmuls + bias + relu).
# -----------------------------------------------------------------------------
def _gen2_kernel(n_hidden, *refs):
    if n_hidden > 0:
        (noise_ref, x_ref, w1n_ref, w1x_ref, b1_ref,
         wh_ref, bh_ref, wo_ref, bo_ref, out_ref) = refs
    else:
        (noise_ref, x_ref, w1n_ref, w1x_ref, b1_ref,
         wo_ref, bo_ref, out_ref) = refs
        wh_ref = bh_ref = None

    # fc1 on the split inputs (concat folded into two matmuls), no activation.
    r = (jnp.dot(noise_ref[...], w1n_ref[...], preferred_element_type=jnp.float32)
         + jnp.dot(x_ref[...], w1x_ref[...], preferred_element_type=jnp.float32)
         + b1_ref[...])

    # Hidden layers: linear + ReLU.  L is small & static -> unrolled loop.
    # TODO(synk): for large L*H^2 (v7x 64 MiB VMEM), switch to per-layer weight
    # streaming (emit_pipeline / layer grid axis) + lax.fori_loop(unroll=True).
    for k in range(n_hidden):
        r = jnp.dot(r, wh_ref[k], preferred_element_type=jnp.float32) + bh_ref[k]
        r = jnp.maximum(r, 0.0)

    # Output layer: linear, no activation.  out_ref is lane-dense (O padded
    # to a multiple of 128); padded weight/bias columns are zero.
    out = jnp.dot(r, wo_ref[...], preferred_element_type=jnp.float32) + bo_ref[...]
    out_ref[...] = out.astype(out_ref.dtype)


# -----------------------------------------------------------------------------
# Parameter init mirroring nn.Linear defaults (U[-1/sqrt(fan_in), 1/sqrt(fan_in)]).
# -----------------------------------------------------------------------------
def init_gen2_params(key, d_noise_num_of_input, layer, gan_hidden_dim,
                     num_of_output, dtype=jnp.float32):
    def linear(k, fan_in, fan_out):
        kw, kb = jax.random.split(k)
        bound = 1.0 / jnp.sqrt(fan_in)
        w = jax.random.uniform(kw, (fan_in, fan_out), dtype, -bound, bound)
        b = jax.random.uniform(kb, (1, fan_out), dtype, -bound, bound)
        return w, b

    keys = jax.random.split(key, layer + 2)
    w1, b1 = linear(keys[0], d_noise_num_of_input, gan_hidden_dim)
    wh_list, bh_list = [], []
    for kk in range(layer):
        w, b = linear(keys[1 + kk], gan_hidden_dim, gan_hidden_dim)
        wh_list.append(w)
        bh_list.append(b)
    wo, bo = linear(keys[-1], gan_hidden_dim, num_of_output)

    wh = (jnp.stack(wh_list, axis=0) if layer > 0
          else jnp.zeros((0, gan_hidden_dim, gan_hidden_dim), dtype))
    bh = (jnp.stack(bh_list, axis=0) if layer > 0
          else jnp.zeros((0, 1, gan_hidden_dim), dtype))
    return {"w1": w1, "b1": b1, "wh": wh, "bh": bh, "wo": wo, "bo": bo}


# -----------------------------------------------------------------------------
# Wrapper: batch-grid tiling, resident weights, lane-dense padded output.
# -----------------------------------------------------------------------------
def gen2_forward(params, noise, x, *, tile_b=256):
    """noise: (B, d_noise), x: (B, d_x); d_noise + d_x == fc1 in_features."""
    B, Dn = noise.shape
    Bx, Dx = x.shape
    assert B == Bx
    H = params["w1"].shape[1]
    L = int(params["wh"].shape[0])
    O = params["wo"].shape[1]
    dtype = noise.dtype

    # Lane-dense output: pad O up to a multiple of 128 (unmasked vst stores).
    O_pad = _round_up(O, _LANES)
    wo = jnp.pad(params["wo"], ((0, 0), (0, O_pad - O)))
    bo = jnp.pad(params["bo"], ((0, 0), (0, O_pad - O)))

    # Split fc1 weight so we never materialize concat([noise, x]) in HBM.
    w1n = params["w1"][:Dn]
    w1x = params["w1"][Dn:]

    # Batch tiling: tile_b rows per grid step (256 fills the 256x256 MXUs on
    # v6e/v7x and is harmless on v5e); small batches collapse to one step.
    if B <= tile_b:
        tb = max(_round_up(B, _SUBLANES), _SUBLANES)
        B_pad = tb
    else:
        tb = tile_b
        B_pad = _round_up(B, tb)
    if B_pad != B:
        noise = jnp.pad(noise, ((0, B_pad - B), (0, 0)))
        x = jnp.pad(x, ((0, B_pad - B), (0, 0)))
    grid = (B_pad // tb,)

    batch2 = lambda i: (i, 0)          # batch-tiled arrays
    const2 = lambda i: (0, 0)          # VMEM-resident weights/biases
    const3 = lambda i: (0, 0, 0)

    operands = [noise, x, w1n, w1x, params["b1"]]
    in_specs = [
        pl.BlockSpec((tb, Dn), batch2),
        pl.BlockSpec((tb, Dx), batch2),
        pl.BlockSpec((Dn, H), const2),
        pl.BlockSpec((Dx, H), const2),
        pl.BlockSpec((1, H), const2),
    ]
    if L > 0:  # skip zero-extent hidden stack when layer == 0
        operands += [params["wh"], params["bh"]]
        in_specs += [
            pl.BlockSpec((L, H, H), const3),
            pl.BlockSpec((L, 1, H), const3),
        ]
    operands += [wo, bo]
    in_specs += [
        pl.BlockSpec((H, O_pad), const2),
        pl.BlockSpec((1, O_pad), const2),
    ]
    out_spec = pl.BlockSpec((tb, O_pad), batch2)

    # Scheduling hints: cost estimate + an explicit VMEM budget sized from the
    # resident weights and double-buffered batch tiles.
    flops = 2 * B_pad * (Dn * H + Dx * H + L * H * H + H * O_pad)
    weight_bytes = sum(int(a.size) * a.dtype.itemsize for a in operands[2:])
    tile_bytes = dtype.itemsize * tb * (Dn + Dx + 2 * H + O_pad)
    bytes_accessed = weight_bytes + dtype.itemsize * B_pad * (Dn + Dx + O_pad)
    vmem_limit = int(min(120 << 20,
                         max(32 << 20, 2 * weight_bytes + 4 * tile_bytes + (4 << 20))))

    out_padded = pl.pallas_call(
        functools.partial(_gen2_kernel, L),
        out_shape=jax.ShapeDtypeStruct((B_pad, O_pad), dtype),
        grid=grid,
        in_specs=in_specs,
        out_specs=out_spec,
        compiler_params=pltpu.CompilerParams(
            dimension_semantics=("parallel",),
            vmem_limit_bytes=vmem_limit),
        cost_estimate=pl.CostEstimate(
            flops=flops, transcendentals=0, bytes_accessed=bytes_accessed),
    )(*operands)

    return out_padded[:B, :O]


# -----------------------------------------------------------------------------
# Pure-JAX reference for correctness checking.
# -----------------------------------------------------------------------------
def gen2_reference(params, noise, x):
    r = jnp.concatenate([noise, x], axis=1) @ params["w1"] + params["b1"]
    for k in range(params["wh"].shape[0]):
        r = jax.nn.relu(r @ params["wh"][k] + params["bh"][k])
    return r @ params["wo"] + params["bo"]


if __name__ == "__main__":
    # Small shapes consistent with the module: fc1 in_features = noise + x dims.
    batch = 8
    d_noise = 16
    d_x = 16
    d_noise_num_of_input = d_noise + d_x      # 32
    layer = 2
    gan_hidden_dim = 32
    num_of_output = 8

    key = jax.random.PRNGKey(0)
    kp, kn, kx = jax.random.split(key, 3)

    params = init_gen2_params(kp, d_noise_num_of_input, layer,
                              gan_hidden_dim, num_of_output)
    noise = jax.random.normal(kn, (batch, d_noise), jnp.float32)
    x = jax.random.normal(kx, (batch, d_x), jnp.float32)

    out = gen2_forward(params, noise, x)
    out = jax.block_until_ready(out)

    ref = gen2_reference(params, noise, x)
    assert out.shape == (batch, num_of_output)
    assert jnp.allclose(out, ref, atol=1e-5, rtol=1e-5)

    # Also exercise the layer == 0 path (no hidden stack passed to the kernel).
    params0 = init_gen2_params(kp, d_noise_num_of_input, 0,
                               gan_hidden_dim, num_of_output)
    out0 = jax.block_until_ready(gen2_forward(params0, noise, x))
    ref0 = gen2_reference(params0, noise, x)
    assert jnp.allclose(out0, ref0, atol=1e-5, rtol=1e-5)

    print("KERNEL_OK")
</pallas_src>

<mosaic_0001>
module attributes {stable_mosaic.version = 11 : i64} {
  func.func @_gen2_kernel(%arg0: i32, %arg1: memref<8x16xf32, #tpu.memory_space<vmem>>, %arg2: memref<8x16xf32, #tpu.memory_space<vmem>>, %arg3: memref<16x32xf32, #tpu.memory_space<vmem>>, %arg4: memref<16x32xf32, #tpu.memory_space<vmem>>, %arg5: memref<1x32xf32, #tpu.memory_space<vmem>>, %arg6: memref<2x32x32xf32, #tpu.memory_space<vmem>>, %arg7: memref<2x1x32xf32, #tpu.memory_space<vmem>>, %arg8: memref<32x128xf32, #tpu.memory_space<vmem>>, %arg9: memref<1x128xf32, #tpu.memory_space<vmem>>, %arg10: memref<8x128xf32, #tpu.memory_space<vmem>>) attributes {dimension_semantics = [#tpu.dimension_semantics<parallel>], iteration_bounds = array<i64: 1>, scalar_prefetch = 0 : i64, scratch_operands = 0 : i64, tpu.core_type = #tpu.core_type<tc>, window_params = [{transform_indices = @transform_0, window_bounds = array<i64: 8, 16>}, {transform_indices = @transform_1, window_bounds = array<i64: 8, 16>}, {pipeline_mode = #tpu.pipeline_mode<synchronous>, transform_indices = @transform_2, window_bounds = array<i64: 16, 32>}, {pipeline_mode = #tpu.pipeline_mode<synchronous>, transform_indices = @transform_3, window_bounds = array<i64: 16, 32>}, {pipeline_mode = #tpu.pipeline_mode<synchronous>, transform_indices = @transform_4, window_bounds = array<i64: 1, 32>}, {pipeline_mode = #tpu.pipeline_mode<synchronous>, transform_indices = @transform_5, window_bounds = array<i64: 2, 32, 32>}, {pipeline_mode = #tpu.pipeline_mode<synchronous>, transform_indices = @transform_6, window_bounds = array<i64: 2, 1, 32>}, {pipeline_mode = #tpu.pipeline_mode<synchronous>, transform_indices = @transform_7, window_bounds = array<i64: 32, 128>}, {pipeline_mode = #tpu.pipeline_mode<synchronous>, transform_indices = @transform_8, window_bounds = array<i64: 1, 128>}, {transform_indices = @transform_9, window_bounds = array<i64: 8, 128>}]} {
    %c0 = arith.constant 0 : index
    %c0_0 = arith.constant 0 : index
    %0 = vector.load %arg1[%c0, %c0_0] : memref<8x16xf32, #tpu.memory_space<vmem>>, vector<8x16xf32>
    %c0_1 = arith.constant 0 : index
    %c0_2 = arith.constant 0 : index
    %1 = vector.load %arg3[%c0_1, %c0_2] : memref<16x32xf32, #tpu.memory_space<vmem>>, vector<16x32xf32>
    %cst = arith.constant dense<0.000000e+00> : vector<8x32xf32>
    %2 = tpu.matmul %0, %1, %cst {dimension_numbers = #tpu.dot_dimension_numbers<[1], [0], [0], [1], [0, 0, 1, 1], [], []>} : vector<8x16xf32>, vector<16x32xf32>, vector<8x32xf32> -> vector<8x32xf32>
    %c0_3 = arith.constant 0 : index
    %c0_4 = arith.constant 0 : index
    %3 = vector.load %arg2[%c0_3, %c0_4] : memref<8x16xf32, #tpu.memory_space<vmem>>, vector<8x16xf32>
    %c0_5 = arith.constant 0 : index
    %c0_6 = arith.constant 0 : index
    %4 = vector.load %arg4[%c0_5, %c0_6] : memref<16x32xf32, #tpu.memory_space<vmem>>, vector<16x32xf32>
    %cst_7 = arith.constant dense<0.000000e+00> : vector<8x32xf32>
    %5 = tpu.matmul %3, %4, %cst_7 {dimension_numbers = #tpu.dot_dimension_numbers<[1], [0], [0], [1], [0, 0, 1, 1], [], []>} : vector<8x16xf32>, vector<16x32xf32>, vector<8x32xf32> -> vector<8x32xf32>
    %6 = arith.addf %2, %5 : vector<8x32xf32>
    %c0_8 = arith.constant 0 : index
    %c0_9 = arith.constant 0 : index
    %7 = vector.load %arg5[%c0_8, %c0_9] : memref<1x32xf32, #tpu.memory_space<vmem>>, vector<1x32xf32>
    %8 = vector.broadcast %7 : vector<1x32xf32> to vector<8x32xf32>
    %9 = arith.addf %6, %8 : vector<8x32xf32>
    %c0_10 = arith.constant 0 : index
    %c0_11 = arith.constant 0 : index
    %c0_12 = arith.constant 0 : index
    %10 = vector.load %arg6[%c0_10, %c0_11, %c0_12] : memref<2x32x32xf32, #tpu.memory_space<vmem>>, vector<1x32x32xf32>
    %11 = vector.shape_cast %10 : vector<1x32x32xf32> to vector<32x32xf32>
    %cst_13 = arith.constant dense<0.000000e+00> : vector<8x32xf32>
    %12 = tpu.matmul %9, %11, %cst_13 {dimension_numbers = #tpu.dot_dimension_numbers<[1], [0], [0], [1], [0, 0, 1, 1], [], []>} : vector<8x32xf32>, vector<32x32xf32>, vector<8x32xf32> -> vector<8x32xf32>
    %c0_14 = arith.constant 0 : index
    %c0_15 = arith.constant 0 : index
    %c0_16 = arith.constant 0 : index
    %13 = vector.load %arg7[%c0_14, %c0_15, %c0_16] : memref<2x1x32xf32, #tpu.memory_space<vmem>>, vector<1x1x32xf32>
    %14 = vector.shape_cast %13 : vector<1x1x32xf32> to vector<1x32xf32>
    %15 = vector.broadcast %14 : vector<1x32xf32> to vector<8x32xf32>
    %16 = arith.addf %12, %15 : vector<8x32xf32>
    %cst_17 = arith.constant 0.000000e+00 : f32
    %17 = vector.broadcast %cst_17 : f32 to vector<8x32xf32>
    %18 = arith.maximumf %16, %17 : vector<8x32xf32>
    %c1 = arith.constant 1 : index
    %c0_18 = arith.constant 0 : index
    %c0_19 = arith.constant 0 : index
    %19 = vector.load %arg6[%c1, %c0_18, %c0_19] : memref<2x32x32xf32, #tpu.memory_space<vmem>>, vector<1x32x32xf32>
    %20 = vector.shape_cast %19 : vector<1x32x32xf32> to vector<32x32xf32>
    %cst_20 = arith.constant dense<0.000000e+00> : vector<8x32xf32>
    %21 = tpu.matmul %18, %20, %cst_20 {dimension_numbers = #tpu.dot_dimension_numbers<[1], [0], [0], [1], [0, 0, 1, 1], [], []>} : vector<8x32xf32>, vector<32x32xf32>, vector<8x32xf32> -> vector<8x32xf32>
    %c1_21 = arith.constant 1 : index
    %c0_22 = arith.constant 0 : index
    %c0_23 = arith.constant 0 : index
    %22 = vector.load %arg7[%c1_21, %c0_22, %c0_23] : memref<2x1x32xf32, #tpu.memory_space<vmem>>, vector<1x1x32xf32>
    %23 = vector.shape_cast %22 : vector<1x1x32xf32> to vector<1x32xf32>
    %24 = vector.broadcast %23 : vector<1x32xf32> to vector<8x32xf32>
    %25 = arith.addf %21, %24 : vector<8x32xf32>
    %cst_24 = arith.constant 0.000000e+00 : f32
    %26 = vector.broadcast %cst_24 : f32 to vector<8x32xf32>
    %27 = arith.maximumf %25, %26 : vector<8x32xf32>
    %c0_25 = arith.constant 0 : index
    %c0_26 = arith.constant 0 : index
    %28 = vector.load %arg8[%c0_25, %c0_26] : memref<32x128xf32, #tpu.memory_space<vmem>>, vector<32x128xf32>
    %cst_27 = arith.constant dense<0.000000e+00> : vector<8x128xf32>
    %29 = tpu.matmul %27, %28, %cst_27 {dimension_numbers = #tpu.dot_dimension_numbers<[1], [0], [0], [1], [0, 0, 1, 1], [], []>} : vector<8x32xf32>, vector<32x128xf32>, vector<8x128xf32> -> vector<8x128xf32>
    %c0_28 = arith.constant 0 : index
    %c0_29 = arith.constant 0 : index
    %30 = vector.load %arg9[%c0_28, %c0_29] : memref<1x128xf32, #tpu.memory_space<vmem>>, vector<1x128xf32>
    %31 = vector.broadcast %30 : vector<1x128xf32> to vector<8x128xf32>
    %32 = arith.addf %29, %31 : vector<8x128xf32>
    %c0_30 = arith.constant 0 : index
    %c0_31 = arith.constant 0 : index
    %33 = vector.load %arg10[%c0_30, %c0_31] : memref<8x128xf32, #tpu.memory_space<vmem>>, vector<8x128xf32>
    tpu.vector_store %arg10[%c0_30, %c0_31], %32 {strides = array<i32>} : memref<8x128xf32, #tpu.memory_space<vmem>>, vector<8x128xf32>,
    return
  }
  func.func @transform_0(%arg0: i32) -> (i32, i32) {
    %c0_i32 = arith.constant 0 : i32
    %c0_i32_0 = arith.constant 0 : i32
    return %arg0, %c0_i32 : i32, i32
  }
  func.func @transform_1(%arg0: i32) -> (i32, i32) {
    %c0_i32 = arith.constant 0 : i32
    %c0_i32_0 = arith.constant 0 : i32
    return %arg0, %c0_i32 : i32, i32
  }
  func.func @transform_2(%arg0: i32) -> (i32, i32) {
    %c0_i32 = arith.constant 0 : i32
    %c0_i32_0 = arith.constant 0 : i32
    %c0_i32_1 = arith.constant 0 : i32
    return %c0_i32, %c0_i32_0 : i32, i32
  }
  func.func @transform_3(%arg0: i32) -> (i32, i32) {
    %c0_i32 = arith.constant 0 : i32
    %c0_i32_0 = arith.constant 0 : i32
    %c0_i32_1 = arith.constant 0 : i32
    return %c0_i32, %c0_i32_0 : i32, i32
  }
  func.func @transform_4(%arg0: i32) -> (i32, i32) {
    %c0_i32 = arith.constant 0 : i32
    %c0_i32_0 = arith.constant 0 : i32
    %c0_i32_1 = arith.constant 0 : i32
    return %c0_i32, %c0_i32_0 : i32, i32
  }
  func.func @transform_5(%arg0: i32) -> (i32, i32, i32) {
    %c0_i32 = arith.constant 0 : i32
    %c0_i32_0 = arith.constant 0 : i32
    %c0_i32_1 = arith.constant 0 : i32
    %c0_i32_2 = arith.constant 0 : i32
    return %c0_i32, %c0_i32_0, %c0_i32_1 : i32, i32, i32
  }
  func.func @transform_6(%arg0: i32) -> (i32, i32, i32) {
    %c0_i32 = arith.constant 0 : i32
    %c0_i32_0 = arith.constant 0 : i32
    %c0_i32_1 = arith.constant 0 : i32
    %c0_i32_2 = arith.constant 0 : i32
    return %c0_i32, %c0_i32_0, %c0_i32_1 : i32, i32, i32
  }
  func.func @transform_7(%arg0: i32) -> (i32, i32) {
    %c0_i32 = arith.constant 0 : i32
    %c0_i32_0 = arith.constant 0 : i32
    %c0_i32_1 = arith.constant 0 : i32
    return %c0_i32, %c0_i32_0 : i32, i32
  }
  func.func @transform_8(%arg0: i32) -> (i32, i32) {
    %c0_i32 = arith.constant 0 : i32
    %c0_i32_0 = arith.constant 0 : i32
    %c0_i32_1 = arith.constant 0 : i32
    return %c0_i32, %c0_i32_0 : i32, i32
  }
  func.func @transform_9(%arg0: i32) -> (i32, i32) {
    %c0_i32 = arith.constant 0 : i32
    %c0_i32_0 = arith.constant 0 : i32
    return %arg0, %c0_i32 : i32, i32
  }
}

</mosaic_0001>

<llo_original>
// kernel: tpu_custom_call.1
$region0: #{tpu_custom_call.1}
  #allocation0 [shape = 'u32[]', space=smem, size = 0x4, offset = 0x4, fixed_abs, tag = 'smem constant byte address 0x4 - core index']
  #allocation1 [shape = 'u32[144,128]{1,0:T(1,128)}', space=vmem, size = 0x12000, scoped, tag = 'internal scratch']
  %s0 = inlined_call_operand.hbm [shape: f32[8,16], index: 0, kind: input, shape index: {}]
  %s1 = inlined_call_operand.hbm [shape: f32[8,16], index: 1, kind: input, shape index: {}]
  %s2 = inlined_call_operand.hbm [shape: f32[16,32], index: 2, kind: input, shape index: {}]
  %s3 = inlined_call_operand.hbm [shape: f32[16,32], index: 3, kind: input, shape index: {}]
  %s4 = inlined_call_operand.vmem [shape: f32[1,32], index: 4, kind: input, shape index: {}]
  %s5 = inlined_call_operand.hbm [shape: f32[2,32,32], index: 5, kind: input, shape index: {}]
  %s6 = inlined_call_operand.vmem [shape: f32[2,1,32], index: 6, kind: input, shape index: {}]
  %s7 = inlined_call_operand.hbm [shape: f32[32,128], index: 7, kind: input, shape index: {}]
  %s8 = inlined_call_operand.vmem [shape: f32[1,128], index: 8, kind: input, shape index: {}]
  %s9 = inlined_call_operand.hbm [shape: f32[8,128], index: 9, kind: output, shape index: {}]
  %s10 = sld [smem:[#allocation0]]
  $region70: #{tpu_custom_call.1} parent=0
    _
  %s12 = ssub.s32 1, %s10
  %s13 = scalar_select 0, %s12, %s10
  $region1: #{tpu_custom_call.1} parent=0
    #allocation2 [shape = 'u8[4096]{0}', space=vmem, size = 0x1000, scoped, tag = 'input window, operand 0, single buffered']
    #allocation3 [shape = 's32[1]{0}', space=sflag, size = 0x4, scoped, tag = 'scoped memory for tpu_custom_call.1']
    #allocation4 [shape = 's32[1]{0}', space=sflag, size = 0x4, scoped, tag = 'scoped memory for tpu_custom_call.1']
    #allocation5 [shape = 'u8[4096]{0}', space=vmem, size = 0x1000, scoped, tag = 'input window, operand 1, single buffered']
    #allocation6 [shape = 's32[1]{0}', space=sflag, size = 0x4, scoped, tag = 'scoped memory for tpu_custom_call.1']
    #allocation7 [shape = 'u8[8192]{0}', space=vmem, size = 0x2000, scoped, tag = 'input window, operand 2, single buffered']
    #allocation8 [shape = 'u8[8192]{0}', space=vmem, size = 0x2000, scoped, tag = 'input window, operand 3, single buffered']
    #allocation9 [shape = 's32[1]{0}', space=sflag, size = 0x4, scoped, tag = 'scoped memory for tpu_custom_call.1']
    #allocation10 [shape = 'u8[32768]{0}', space=vmem, size = 0x8000, scoped, tag = 'input window, operand 5, single buffered']
    #allocation11 [shape = 'u8[16384]{0}', space=vmem, size = 0x4000, scoped, tag = 'input window, operand 7, single buffered']
    #allocation12 [shape = 's32[1]{0}', space=sflag, size = 0x4, scoped, tag = 'scoped memory for tpu_custom_call.1']
    #allocation13 [shape = 'u8[4096]{0}', space=vmem, size = 0x1000, scoped, tag = 'output window, operand 0, single buffered']
    %14 = vsyncpa [#allocation3], 0
    %15 = vsyncpa [#allocation6], 0
    %16 = vsyncpa [#allocation9], 0
    %17 = vsyncpa [#allocation12], 0
    %18 = vsyncpa [#allocation4], 0
    // Predicated region
    $region2: #{tpu_custom_call.1} parent=1 // pred_check
      _
    $region3: #{tpu_custom_call.1} parent=1 // pred_check_branch
      %20 = sbr.rel (0) target = $region5
    $region4: #{tpu_custom_call.1} parent=1 // pred_region
      %s22 = ssub.s32 128, 128
      %23 = vsyncadd [#allocation3], %s22
      %s25 = sshll.u32 [#allocation2], 4
      %s26 = int_to_ptr.vmem [resolvable:$true] %s25
      %28 = dma.hbm_to_vmem [thread:$0]  %s0, 128, %s26, [#allocation3]
    $region5: #{tpu_custom_call.1} parent=1 // pred_fallthru
      _
    // Predicated region
    $region6: #{tpu_custom_call.1} parent=1 // pred_check
      _
    $region7: #{tpu_custom_call.1} parent=1 // pred_check_branch
      %30 = sbr.rel (0) target = $region9
    $region8: #{tpu_custom_call.1} parent=1 // pred_region
      %s32 = ssub.s32 128, 128
      %33 = vsyncadd [#allocation6], %s32
      %s35 = sshll.u32 [#allocation5], 4
      %s36 = int_to_ptr.vmem [resolvable:$true] %s35
      %38 = dma.hbm_to_vmem [thread:$0]  %s1, 128, %s36, [#allocation6]
    $region9: #{tpu_custom_call.1} parent=1 // pred_fallthru
      _
    // Predicated region
    $region10: #{tpu_custom_call.1} parent=1 // pred_check
      _
    $region11: #{tpu_custom_call.1} parent=1 // pred_check_branch
      %40 = sbr.rel (0) target = $region13
    $region12: #{tpu_custom_call.1} parent=1 // pred_region
      %s42 = ssub.s32 256, 256
      %43 = vsyncadd [#allocation6], %s42
      %s44 = sshll.u32 [#allocation7], 4
      %s45 = int_to_ptr.vmem [resolvable:$true] %s44
      %50 = dma.hbm_to_vmem [thread:$0]  %s2, 256, %s45, [#allocation6], 128, 128, 8
    $region13: #{tpu_custom_call.1} parent=1 // pred_fallthru
      _
    // Predicated region
    $region14: #{tpu_custom_call.1} parent=1 // pred_check
      _
    $region15: #{tpu_custom_call.1} parent=1 // pred_check_branch
      %52 = sbr.rel (0) target = $region17
    $region16: #{tpu_custom_call.1} parent=1 // pred_region
      %s54 = ssub.s32 256, 256
      %55 = vsyncadd [#allocation9], %s54
      %s56 = sshll.u32 [#allocation8], 4
      %s57 = int_to_ptr.vmem [resolvable:$true] %s56
      %62 = dma.hbm_to_vmem [thread:$0]  %s3, 256, %s57, [#allocation9], 128, 128, 8
    $region17: #{tpu_custom_call.1} parent=1 // pred_fallthru
      _
    // Predicated region
    $region18: #{tpu_custom_call.1} parent=1 // pred_check
      _
    $region19: #{tpu_custom_call.1} parent=1 // pred_check_branch
      %64 = sbr.rel (0) target = $region21
    $region20: #{tpu_custom_call.1} parent=1 // pred_region
      _
    $region21: #{tpu_custom_call.1} parent=1 // pred_fallthru
      _
    // Predicated region
    $region22: #{tpu_custom_call.1} parent=1 // pred_check
      _
    $region23: #{tpu_custom_call.1} parent=1 // pred_check_branch
      %66 = sbr.rel (0) target = $region25
    $region24: #{tpu_custom_call.1} parent=1 // pred_region
      %s68 = ssub.s32 1024, 1024
      %69 = vsyncadd [#allocation9], %s68
      %s70 = sshll.u32 [#allocation10], 4
      %s71 = int_to_ptr.vmem [resolvable:$true] %s70
      %76 = dma.hbm_to_vmem [thread:$0]  %s5, 1024, %s71, [#allocation9], 128, 128, 8
    $region25: #{tpu_custom_call.1} parent=1 // pred_fallthru
      _
    // Predicated region
    $region26: #{tpu_custom_call.1} parent=1 // pred_check
      _
    $region27: #{tpu_custom_call.1} parent=1 // pred_check_branch
      %78 = sbr.rel (0) target = $region29
    $region28: #{tpu_custom_call.1} parent=1 // pred_region
      _
    $region29: #{tpu_custom_call.1} parent=1 // pred_fallthru
      _
    // Predicated region
    $region30: #{tpu_custom_call.1} parent=1 // pred_check
      _
    $region31: #{tpu_custom_call.1} parent=1 // pred_check_branch
      %80 = sbr.rel (0) target = $region33
    $region32: #{tpu_custom_call.1} parent=1 // pred_region
      %s82 = ssub.s32 512, 512
      %83 = vsyncadd [#allocation12], %s82
      %s84 = sshll.u32 [#allocation11], 4
      %s85 = int_to_ptr.vmem [resolvable:$true] %s84
      %90 = dma.hbm_to_vmem [thread:$0]  %s7, 512, %s85, [#allocation12], 128, 128, 8
    $region33: #{tpu_custom_call.1} parent=1 // pred_fallthru
      _
    // Predicated region
    $region34: #{tpu_custom_call.1} parent=1 // pred_check
      _
    $region35: #{tpu_custom_call.1} parent=1 // pred_check_branch
      %92 = sbr.rel (0) target = $region37
    $region36: #{tpu_custom_call.1} parent=1 // pred_region
      _
    $region37: #{tpu_custom_call.1} parent=1 // pred_fallthru
      _
    // Predicated region
    $region38: #{tpu_custom_call.1} parent=1 // pred_check
      _
    $region39: #{tpu_custom_call.1} parent=1 // pred_check_branch
      %94 = sbr.rel (0) target = $region41
    $region40: #{tpu_custom_call.1} parent=1 // pred_region
      %95 = dma.done [#allocation3], 128
    $region41: #{tpu_custom_call.1} parent=1 // pred_fallthru
      _
    // Predicated region
    $region42: #{tpu_custom_call.1} parent=1 // pred_check
      _
    $region43: #{tpu_custom_call.1} parent=1 // pred_check_branch
      %97 = sbr.rel (0) target = $region45
    $region44: #{tpu_custom_call.1} parent=1 // pred_region
      %98 = dma.done [#allocation6], 128
    $region45: #{tpu_custom_call.1} parent=1 // pred_fallthru
      _
    // Predicated region
    $region46: #{tpu_custom_call.1} parent=1 // pred_check
      _
    $region47: #{tpu_custom_call.1} parent=1 // pred_check_branch
      %100 = sbr.rel (0) target = $region49
    $region48: #{tpu_custom_call.1} parent=1 // pred_region
      %101 = dma.done [#allocation6], 256
    $region49: #{tpu_custom_call.1} parent=1 // pred_fallthru
      _
    // Predicated region
    $region50: #{tpu_custom_call.1} parent=1 // pred_check
      _
    $region51: #{tpu_custom_call.1} parent=1 // pred_check_branch
      %103 = sbr.rel (0) target = $region53
    $region52: #{tpu_custom_call.1} parent=1 // pred_region
      %104 = dma.done [#allocation9], 256
    $region53: #{tpu_custom_call.1} parent=1 // pred_fallthru
      _
    // Predicated region
    $region54: #{tpu_custom_call.1} parent=1 // pred_check
      _
    $region55: #{tpu_custom_call.1} parent=1 // pred_check_branch
      %106 = sbr.rel (0) target = $region57
    $region56: #{tpu_custom_call.1} parent=1 // pred_region
      %107 = dma.done [#allocation9], 1024
    $region57: #{tpu_custom_call.1} parent=1 // pred_fallthru
      _
    // Predicated region
    $region58: #{tpu_custom_call.1} parent=1 // pred_check
      _
    $region59: #{tpu_custom_call.1} parent=1 // pred_check_branch
      %109 = sbr.rel (0) target = $region61
    $region60: #{tpu_custom_call.1} parent=1 // pred_region
      %110 = dma.done [#allocation12], 512
    $region61: #{tpu_custom_call.1} parent=1 // pred_fallthru
      _
    %v111 = vld [vmem:[#allocation2] sm:$0xff]
    %v112 = vld [vmem:[#allocation7] sm:$0xff]
    %v113 = vld [vmem:[#allocation7 + $0x8] sm:$0xff]
    %v114 = vld [vmem:[#allocation5] sm:$0xff]
    %v115 = vld [vmem:[#allocation8] sm:$0xff]
    %v116 = vld [vmem:[#allocation8 + $0x8] sm:$0xff]
    %vm117 = vcmask 130048
    %v119 = vsel %vm117, %v114, 0
    %121 = vmatprep.subr.mxu0 0.0
    %122 = vmatpush1.msra.mxu0 0.0
    %123 = vmatprep.subr.mxu0 0.0
    %124 = vmatpush1.msra.mxu0 0.0
    %125 = vmatprep.subr.mxu0 0.0
    %126 = vmatpush1.msra.mxu0 0.0
    %127 = vmatprep.subr.mxu0 0.0
    %128 = vmatpush1.msra.mxu0 0.0
    %129 = vmatprep.subr.mxu0 0.0
    %130 = vmatpush1.msra.mxu0 0.0
    %131 = vmatprep.subr.mxu0 0.0
    %132 = vmatpush1.msra.mxu0 0.0
    %133 = vmatprep.subr.mxu0 0.0
    %134 = vmatpush1.msra.mxu0 0.0
    %135 = vmatprep.subr.mxu0 0.0
    %136 = vmatpush1.msra.mxu0 0.0
    %137 = vmatprep.subr.mxu0 0.0
    %138 = vmatpush1.msra.mxu0 0.0
    %139 = vmatprep.subr.mxu0 0.0
    %140 = vmatpush1.msra.mxu0 0.0
    %141 = vmatprep.subr.mxu0 0.0
    %142 = vmatpush1.msra.mxu0 0.0
    %143 = vmatprep.subr.mxu0 0.0
    %144 = vmatpush1.msra.mxu0 0.0
    %145 = vmatprep.subr.mxu0 0.0
    %146 = vmatpush1.msra.mxu0 0.0
    %147 = vmatprep.subr.mxu0 0.0
    %148 = vmatpush1.msra.mxu0 0.0
    %149 = vmatprep.subr.mxu0 0.0
    %150 = vmatpush1.msra.mxu0 %v116
    %151 = vmatprep.subr.mxu0 0.0
    %152 = vmatpush1.msra.mxu0 %v115
    %153 = vmatprep.subr.mxu0 0.0
    %154 = vmatpush2.msra.mxu0 0.0
    %155 = vmatprep.subr.mxu0 0.0
    %156 = vmatpush2.msra.mxu0 0.0
    %157 = vmatprep.subr.mxu0 0.0
    %158 = vmatpush2.msra.mxu0 0.0
    %159 = vmatprep.subr.mxu0 0.0
    %160 = vmatpush2.msra.mxu0 0.0
    %161 = vmatprep.subr.mxu0 0.0
    %162 = vmatpush2.msra.mxu0 0.0
    %163 = vmatprep.subr.mxu0 0.0
    %164 = vmatpush2.msra.mxu0 0.0
    %165 = vmatprep.subr.mxu0 0.0
    %166 = vmatpush2.msra.mxu0 0.0
    %167 = vmatprep.subr.mxu0 0.0
    %168 = vmatpush2.msra.mxu0 0.0
    %169 = vmatprep.subr.mxu0 0.0
    %170 = vmatpush2.msra.mxu0 0.0
    %171 = vmatprep.subr.mxu0 0.0
    %172 = vmatpush2.msra.mxu0 0.0
    %173 = vmatprep.subr.mxu0 0.0
    %174 = vmatpush2.msra.mxu0 0.0
    %175 = vmatprep.subr.mxu0 0.0
    %176 = vmatpush2.msra.mxu0 0.0
    %177 = vmatprep.subr.mxu0 0.0
    %178 = vmatpush2.msra.mxu0 0.0
    %179 = vmatprep.subr.mxu0 0.0
    %180 = vmatpush2.msra.mxu0 0.0
    %181 = vmatprep.subr.mxu0 0.0
    %182 = vmatpush2.msra.mxu0 0.0
    %183 = vmatprep.subr.mxu0 0.0
    %184 = vmatpush2.msra.mxu0 0.0
    %185 = vmatprep.mubr.f32.mxu0 0.0
    %186 = vmatmul.mubr.f32.gmra.mxu0 %v119
    %v187 = vpop.f32.mrf.mxu0
    %v188 = vadd.f32 0.0, %v187
    %v189 = vpop.f32.mrf.mxu0
    %190 = vdwg.mxu0
    %v192 = vsel %vm117, %v111, 0
    %194 = vmatprep.subr.mxu0 0.0
    %195 = vmatpush1.msra.mxu0 0.0
    %196 = vmatprep.subr.mxu0 0.0
    %197 = vmatpush1.msra.mxu0 0.0
    %198 = vmatprep.subr.mxu0 0.0
    %199 = vmatpush1.msra.mxu0 0.0
    %200 = vmatprep.subr.mxu0 0.0
    %201 = vmatpush1.msra.mxu0 0.0
    %202 = vmatprep.subr.mxu0 0.0
    %203 = vmatpush1.msra.mxu0 0.0
    %204 = vmatprep.subr.mxu0 0.0
    %205 = vmatpush1.msra.mxu0 0.0
    %206 = vmatprep.subr.mxu0 0.0
    %207 = vmatpush1.msra.mxu0 0.0
    %208 = vmatprep.subr.mxu0 0.0
    %209 = vmatpush1.msra.mxu0 0.0
    %210 = vmatprep.subr.mxu0 0.0
    %211 = vmatpush1.msra.mxu0 0.0
    %212 = vmatprep.subr.mxu0 0.0
    %213 = vmatpush1.msra.mxu0 0.0
    %214 = vmatprep.subr.mxu0 0.0
    %215 = vmatpush1.msra.mxu0 0.0
    %216 = vmatprep.subr.mxu0 0.0
    %217 = vmatpush1.msra.mxu0 0.0
    %218 = vmatprep.subr.mxu0 0.0
    %219 = vmatpush1.msra.mxu0 0.0
    %220 = vmatprep.subr.mxu0 0.0
    %221 = vmatpush1.msra.mxu0 0.0
    %222 = vmatprep.subr.mxu0 0.0
    %223 = vmatpush1.msra.mxu0 %v113
    %224 = vmatprep.subr.mxu0 0.0
    %225 = vmatpush1.msra.mxu0 %v112
    %226 = vmatprep.subr.mxu0 0.0
    %227 = vmatpush2.msra.mxu0 0.0
    %228 = vmatprep.subr.mxu0 0.0
    %229 = vmatpush2.msra.mxu0 0.0
    %230 = vmatprep.subr.mxu0 0.0
    %231 = vmatpush2.msra.mxu0 0.0
    %232 = vmatprep.subr.mxu0 0.0
    %233 = vmatpush2.msra.mxu0 0.0
    %234 = vmatprep.subr.mxu0 0.0
    %235 = vmatpush2.msra.mxu0 0.0
    %236 = vmatprep.subr.mxu0 0.0
    %237 = vmatpush2.msra.mxu0 0.0
    %238 = vmatprep.subr.mxu0 0.0
    %239 = vmatpush2.msra.mxu0 0.0
    %240 = vmatprep.subr.mxu0 0.0
    %241 = vmatpush2.msra.mxu0 0.0
    %242 = vmatprep.subr.mxu0 0.0
    %243 = vmatpush2.msra.mxu0 0.0
    %244 = vmatprep.subr.mxu0 0.0
    %245 = vmatpush2.msra.mxu0 0.0
    %246 = vmatprep.subr.mxu0 0.0
    %247 = vmatpush2.msra.mxu0 0.0
    %248 = vmatprep.subr.mxu0 0.0
    %249 = vmatpush2.msra.mxu0 0.0
    %250 = vmatprep.subr.mxu0 0.0
    %251 = vmatpush2.msra.mxu0 0.0
    %252 = vmatprep.subr.mxu0 0.0
    %253 = vmatpush2.msra.mxu0 0.0
    %254 = vmatprep.subr.mxu0 0.0
    %255 = vmatpush2.msra.mxu0 0.0
    %256 = vmatprep.subr.mxu0 0.0
    %257 = vmatpush2.msra.mxu0 0.0
    %258 = vmatprep.mubr.f32.mxu0 0.0
    %259 = vmatmul.mubr.f32.gmra.mxu0 %v192
    %v260 = vpop.f32.mrf.mxu0
    %v261 = vadd.f32 %v188, %v260
    %v262 = vpop.f32.mrf.mxu0
    %263 = vdwg.mxu0
    %v264 = vld [vmem:[%s4] sm:$0x1]
    %v266 = vlaneseq
    %v267 = vshrl.u32 %v266, 7
    %v268 = vsub.s32 0, %v267
    %v269 = vrot.slane %v264, %v268
    %v271 = vadd.f32 %v261, %v269
    %v272 = vld [vmem:[#allocation10] sm:$0xff]
    %v273 = vld [vmem:[#allocation10 + $0x8] sm:$0xff]
    %v274 = vld [vmem:[#allocation10 + $0x10] sm:$0xff]
    %v275 = vld [vmem:[#allocation10 + $0x18] sm:$0xff]
    %v276 = vld [vmem:[%s6] sm:$0x1]
    %v278 = vlaneseq
    %v279 = vshrl.u32 %v278, 7
    %v280 = vsub.s32 0, %v279
    %v281 = vrot.slane %v276, %v280
    %vm283 = vcmask 261120
    %v285 = vsel %vm283, %v271, 0
    %287 = vmatprep.subr.mxu0 0.0
    %288 = vmatpush1.msra.mxu0 0.0
    %289 = vmatprep.subr.mxu0 0.0
    %290 = vmatpush1.msra.mxu0 0.0
    %291 = vmatprep.subr.mxu0 0.0
    %292 = vmatpush1.msra.mxu0 0.0
    %293 = vmatprep.subr.mxu0 0.0
    %294 = vmatpush1.msra.mxu0 0.0
    %295 = vmatprep.subr.mxu0 0.0
    %296 = vmatpush1.msra.mxu0 0.0
    %297 = vmatprep.subr.mxu0 0.0
    %298 = vmatpush1.msra.mxu0 0.0
    %299 = vmatprep.subr.mxu0 0.0
    %300 = vmatpush1.msra.mxu0 0.0
    %301 = vmatprep.subr.mxu0 0.0
    %302 = vmatpush1.msra.mxu0 0.0
    %303 = vmatprep.subr.mxu0 0.0
    %304 = vmatpush1.msra.mxu0 0.0
    %305 = vmatprep.subr.mxu0 0.0
    %306 = vmatpush1.msra.mxu0 0.0
    %307 = vmatprep.subr.mxu0 0.0
    %308 = vmatpush1.msra.mxu0 0.0
    %309 = vmatprep.subr.mxu0 0.0
    %310 = vmatpush1.msra.mxu0 0.0
    %311 = vmatprep.subr.mxu0 0.0
    %312 = vmatpush1.msra.mxu0 %v275
    %313 = vmatprep.subr.mxu0 0.0
    %314 = vmatpush1.msra.mxu0 %v274
    %315 = vmatprep.subr.mxu0 0.0
    %316 = vmatpush1.msra.mxu0 %v273
    %317 = vmatprep.subr.mxu0 0.0
    %318 = vmatpush1.msra.mxu0 %v272
    %319 = vmatprep.subr.mxu0 0.0
    %320 = vmatpush2.msra.mxu0 0.0
    %321 = vmatprep.subr.mxu0 0.0
    %322 = vmatpush2.msra.mxu0 0.0
    %323 = vmatprep.subr.mxu0 0.0
    %324 = vmatpush2.msra.mxu0 0.0
    %325 = vmatprep.subr.mxu0 0.0
    %326 = vmatpush2.msra.mxu0 0.0
    %327 = vmatprep.subr.mxu0 0.0
    %328 = vmatpush2.msra.mxu0 0.0
    %329 = vmatprep.subr.mxu0 0.0
    %330 = vmatpush2.msra.mxu0 0.0
    %331 = vmatprep.subr.mxu0 0.0
    %332 = vmatpush2.msra.mxu0 0.0
    %333 = vmatprep.subr.mxu0 0.0
    %334 = vmatpush2.msra.mxu0 0.0
    %335 = vmatprep.subr.mxu0 0.0
    %336 = vmatpush2.msra.mxu0 0.0
    %337 = vmatprep.subr.mxu0 0.0
    %338 = vmatpush2.msra.mxu0 0.0
    %339 = vmatprep.subr.mxu0 0.0
    %340 = vmatpush2.msra.mxu0 0.0
    %341 = vmatprep.subr.mxu0 0.0
    %342 = vmatpush2.msra.mxu0 0.0
    %343 = vmatprep.subr.mxu0 0.0
    %344 = vmatpush2.msra.mxu0 0.0
    %345 = vmatprep.subr.mxu0 0.0
    %346 = vmatpush2.msra.mxu0 0.0
    %347 = vmatprep.subr.mxu0 0.0
    %348 = vmatpush2.msra.mxu0 0.0
    %349 = vmatprep.subr.mxu0 0.0
    %350 = vmatpush2.msra.mxu0 0.0
    %351 = vmatprep.mubr.f32.mxu0 0.0
    %352 = vmatmul.mubr.f32.gmra.mxu0 %v285
    %v353 = vpop.f32.mrf.mxu0
    %v354 = vadd.f32 %v281, %v353
    %v355 = vpop.f32.mrf.mxu0
    %356 = vdwg.mxu0
    %v357 = vmax.f32 %v354, 0.0
    %s358 = scalar_lea.vmem [#allocation10], 32
    %v359 = vld [vmem:[%s358] sm:$0xff]
    %v360 = vld [vmem:[%s358 + $0x8] sm:$0xff]
    %v361 = vld [vmem:[%s358 + $0x10] sm:$0xff]
    %v362 = vld [vmem:[%s358 + $0x18] sm:$0xff]
    %s363 = scalar_lea.vmem %s6, 1
    %v364 = vld [vmem:[%s363] sm:$0x1]
    %v366 = vlaneseq
    %v367 = vshrl.u32 %v366, 7
    %v368 = vsub.s32 0, %v367
    %v369 = vrot.slane %v364, %v368
    %v372 = vsel %vm283, %v357, 0
    %374 = vmatprep.subr.mxu0 0.0
    %375 = vmatpush1.msra.mxu0 0.0
    %376 = vmatprep.subr.mxu0 0.0
    %377 = vmatpush1.msra.mxu0 0.0
    %378 = vmatprep.subr.mxu0 0.0
    %379 = vmatpush1.msra.mxu0 0.0
    %380 = vmatprep.subr.mxu0 0.0
    %381 = vmatpush1.msra.mxu0 0.0
    %382 = vmatprep.subr.mxu0 0.0
    %383 = vmatpush1.msra.mxu0 0.0
    %384 = vmatprep.subr.mxu0 0.0
    %385 = vmatpush1.msra.mxu0 0.0
    %386 = vmatprep.subr.mxu0 0.0
    %387 = vmatpush1.msra.mxu0 0.0
    %388 = vmatprep.subr.mxu0 0.0
    %389 = vmatpush1.msra.mxu0 0.0
    %390 = vmatprep.subr.mxu0 0.0
    %391 = vmatpush1.msra.mxu0 0.0
    %392 = vmatprep.subr.mxu0 0.0
    %393 = vmatpush1.msra.mxu0 0.0
    %394 = vmatprep.subr.mxu0 0.0
    %395 = vmatpush1.msra.mxu0 0.0
    %396 = vmatprep.subr.mxu0 0.0
    %397 = vmatpush1.msra.mxu0 0.0
    %398 = vmatprep.subr.mxu0 0.0
    %399 = vmatpush1.msra.mxu0 %v362
    %400 = vmatprep.subr.mxu0 0.0
    %401 = vmatpush1.msra.mxu0 %v361
    %402 = vmatprep.subr.mxu0 0.0
    %403 = vmatpush1.msra.mxu0 %v360
    %404 = vmatprep.subr.mxu0 0.0
    %405 = vmatpush1.msra.mxu0 %v359
    %406 = vmatprep.subr.mxu0 0.0
    %407 = vmatpush2.msra.mxu0 0.0
    %408 = vmatprep.subr.mxu0 0.0
    %409 = vmatpush2.msra.mxu0 0.0
    %410 = vmatprep.subr.mxu0 0.0
    %411 = vmatpush2.msra.mxu0 0.0
    %412 = vmatprep.subr.mxu0 0.0
    %413 = vmatpush2.msra.mxu0 0.0
    %414 = vmatprep.subr.mxu0 0.0
    %415 = vmatpush2.msra.mxu0 0.0
    %416 = vmatprep.subr.mxu0 0.0
    %417 = vmatpush2.msra.mxu0 0.0
    %418 = vmatprep.subr.mxu0 0.0
    %419 = vmatpush2.msra.mxu0 0.0
    %420 = vmatprep.subr.mxu0 0.0
    %421 = vmatpush2.msra.mxu0 0.0
    %422 = vmatprep.subr.mxu0 0.0
    %423 = vmatpush2.msra.mxu0 0.0
    %424 = vmatprep.subr.mxu0 0.0
    %425 = vmatpush2.msra.mxu0 0.0
    %426 = vmatprep.subr.mxu0 0.0
    %427 = vmatpush2.msra.mxu0 0.0
    %428 = vmatprep.subr.mxu0 0.0
    %429 = vmatpush2.msra.mxu0 0.0
    %430 = vmatprep.subr.mxu0 0.0
    %431 = vmatpush2.msra.mxu0 0.0
    %432 = vmatprep.subr.mxu0 0.0
    %433 = vmatpush2.msra.mxu0 0.0
    %434 = vmatprep.subr.mxu0 0.0
    %435 = vmatpush2.msra.mxu0 0.0
    %436 = vmatprep.subr.mxu0 0.0
    %437 = vmatpush2.msra.mxu0 0.0
    %438 = vmatprep.mubr.f32.mxu0 0.0
    %439 = vmatmul.mubr.f32.gmra.mxu0 %v372
    %v440 = vpop.f32.mrf.mxu0
    %v441 = vadd.f32 %v369, %v440
    %v442 = vpop.f32.mrf.mxu0
    %443 = vdwg.mxu0
    %v444 = vmax.f32 %v441, 0.0
    %v445 = vld [vmem:[#allocation11] sm:$0xff]
    %v446 = vld [vmem:[#allocation11 + $0x8] sm:$0xff]
    %v447 = vld [vmem:[#allocation11 + $0x10] sm:$0xff]
    %v448 = vld [vmem:[#allocation11 + $0x18] sm:$0xff]
    %v449 = vld [vmem:[%s8] sm:$0x1]
    %v451 = vlaneseq
    %v452 = vshrl.u32 %v451, 7
    %v453 = vsub.s32 0, %v452
    %v454 = vrot.slane %v449, %v453
    %v457 = vsel %vm283, %v444, 0
    %459 = vmatprep.subr.mxu0 0.0
    %460 = vmatpush1.msra.mxu0 0.0
    %461 = vmatprep.subr.mxu0 0.0
    %462 = vmatpush1.msra.mxu0 0.0
    %463 = vmatprep.subr.mxu0 0.0
    %464 = vmatpush1.msra.mxu0 0.0
    %465 = vmatprep.subr.mxu0 0.0
    %466 = vmatpush1.msra.mxu0 0.0
    %467 = vmatprep.subr.mxu0 0.0
    %468 = vmatpush1.msra.mxu0 0.0
    %469 = vmatprep.subr.mxu0 0.0
    %470 = vmatpush1.msra.mxu0 0.0
    %471 = vmatprep.subr.mxu0 0.0
    %472 = vmatpush1.msra.mxu0 0.0
    %473 = vmatprep.subr.mxu0 0.0
    %474 = vmatpush1.msra.mxu0 0.0
    %475 = vmatprep.subr.mxu0 0.0
    %476 = vmatpush1.msra.mxu0 0.0
    %477 = vmatprep.subr.mxu0 0.0
    %478 = vmatpush1.msra.mxu0 0.0
    %479 = vmatprep.subr.mxu0 0.0
    %480 = vmatpush1.msra.mxu0 0.0
    %481 = vmatprep.subr.mxu0 0.0
    %482 = vmatpush1.msra.mxu0 0.0
    %483 = vmatprep.subr.mxu0 0.0
    %484 = vmatpush1.msra.mxu0 %v448
    %485 = vmatprep.subr.mxu0 0.0
    %486 = vmatpush1.msra.mxu0 %v447
    %487 = vmatprep.subr.mxu0 0.0
    %488 = vmatpush1.msra.mxu0 %v446
    %489 = vmatprep.subr.mxu0 0.0
    %490 = vmatpush1.msra.mxu0 %v445
    %491 = vmatprep.subr.mxu0 0.0
    %492 = vmatpush2.msra.mxu0 0.0
    %493 = vmatprep.subr.mxu0 0.0
    %494 = vmatpush2.msra.mxu0 0.0
    %495 = vmatprep.subr.mxu0 0.0
    %496 = vmatpush2.msra.mxu0 0.0
    %497 = vmatprep.subr.mxu0 0.0
    %498 = vmatpush2.msra.mxu0 0.0
    %499 = vmatprep.subr.mxu0 0.0
    %500 = vmatpush2.msra.mxu0 0.0
    %501 = vmatprep.subr.mxu0 0.0
    %502 = vmatpush2.msra.mxu0 0.0
    %503 = vmatprep.subr.mxu0 0.0
    %504 = vmatpush2.msra.mxu0 0.0
    %505 = vmatprep.subr.mxu0 0.0
    %506 = vmatpush2.msra.mxu0 0.0
    %507 = vmatprep.subr.mxu0 0.0
    %508 = vmatpush2.msra.mxu0 0.0
    %509 = vmatprep.subr.mxu0 0.0
    %510 = vmatpush2.msra.mxu0 0.0
    %511 = vmatprep.subr.mxu0 0.0
    %512 = vmatpush2.msra.mxu0 0.0
    %513 = vmatprep.subr.mxu0 0.0
    %514 = vmatpush2.msra.mxu0 0.0
    %515 = vmatprep.subr.mxu0 0.0
    %516 = vmatpush2.msra.mxu0 0.0
    %517 = vmatprep.subr.mxu0 0.0
    %518 = vmatpush2.msra.mxu0 0.0
    %519 = vmatprep.subr.mxu0 0.0
    %520 = vmatpush2.msra.mxu0 0.0
    %521 = vmatprep.subr.mxu0 0.0
    %522 = vmatpush2.msra.mxu0 0.0
    %523 = vmatprep.mubr.f32.mxu0 0.0
    %524 = vmatmul.mubr.f32.gmra.mxu0 %v457
    %v525 = vpop.f32.mrf.mxu0
    %v526 = vadd.f32 %v454, %v525
    %v527 = vpop.f32.mrf.mxu0
    %528 = vdwg.mxu0
    %529 = vst [vmem:[#allocation13] sm:$0xff] %v526
    // Predicated region
    $region62: #{tpu_custom_call.1} parent=1 // pred_check
      _
    $region63: #{tpu_custom_call.1} parent=1 // pred_check_branch
      %531 = sbr.rel (0) target = $region65
    $region64: #{tpu_custom_call.1} parent=1 // pred_region
      %s533 = ssub.s32 128, 128
      %534 = vsyncadd [#allocation4], %s533
      %s536 = sshll.u32 [#allocation13], 4
      %s537 = int_to_ptr.vmem [resolvable:$true] %s536
      %539 = dma.vmem_to_hbm [thread:$0]  %s537, 128, %s9, [#allocation4]
    $region65: #{tpu_custom_call.1} parent=1 // pred_fallthru
      _
    // Predicated region
    $region66: #{tpu_custom_call.1} parent=1 // pred_check
      _
    $region67: #{tpu_custom_call.1} parent=1 // pred_check_branch
      %541 = sbr.rel (0) target = $region69
    $region68: #{tpu_custom_call.1} parent=1 // pred_region
      %542 = dma.done [#allocation4], 128
    $region69: #{tpu_custom_call.1} parent=1 // pred_fallthru
      _
    %543 = vsyncpa [#allocation3], 1
    %544 = vsyncpa [#allocation6], 1
    %545 = vsyncpa [#allocation9], 1
    %546 = vsyncpa [#allocation12], 1
    %547 = vsyncpa [#allocation4], 1

</llo_original>
